<compile_context>
chip_gen: v7x
topology: tpu7x:2x2x1
jax: 0.10.0
libtpu: 0.0.40
codegen_flags: <defaults>
</compile_context>

<pallas_src>
import jax
import jax.numpy as jnp
from jax.experimental import pallas as pl
from jax.experimental.pallas import tpu as pltpu


# --------------------------------------------------------------------------
# In-kernel helpers (operate on VMEM-resident values)
# --------------------------------------------------------------------------

def _reflect_pad2(x):
    """(P, H, W) -> (P, H+4, W+4), PyTorch F.pad(..., mode='reflect'), pad=2."""
    H = x.shape[1]
    W = x.shape[2]
    x = jnp.concatenate(
        [x[:, 2:3, :], x[:, 1:2, :], x, x[:, H - 2:H - 1, :], x[:, H - 3:H - 2, :]],
        axis=1)
    x = jnp.concatenate(
        [x[:, :, 2:3], x[:, :, 1:2], x, x[:, :, W - 2:W - 1], x[:, :, W - 3:W - 2]],
        axis=2)
    return x


def _sep_gauss5(x):
    """Separable, symmetric 5x5 Gaussian (kernel = outer([1,4,6,4,1])/256)
    with in-kernel reflect padding.  x: (P, H, W) f32 -> (P, H, W) f32."""
    H = x.shape[1]
    W = x.shape[2]
    xp = _reflect_pad2(x)
    # Row pass (lanes / W): fold symmetric taps -> 4 adds + 2 muls per element.
    t = ((xp[:, :, 0:W] + xp[:, :, 4:W + 4])
         + 4.0 * (xp[:, :, 1:W + 1] + xp[:, :, 3:W + 3])
         + 6.0 * xp[:, :, 2:W + 2])
    # Column pass (sublanes / H).
    o = ((t[:, 0:H, :] + t[:, 4:H + 4, :])
         + 4.0 * (t[:, 1:H + 1, :] + t[:, 3:H + 3, :])
         + 6.0 * t[:, 2:H + 2, :])
    return o * (1.0 / 256.0)


# --------------------------------------------------------------------------
# Pallas kernels
# --------------------------------------------------------------------------

def _make_blur_kernel(scale):
    """scale * conv_gauss(x) for a chunk of planes."""
    def kernel(x_ref, o_ref):
        x = x_ref[...].astype(jnp.float32)          # single load + cast
        o_ref[...] = (scale * _sep_gauss5(x)).astype(o_ref.dtype)
    return kernel


def _level_kernel(x_ref, filt_ref, diff_ref):
    """One fused Laplacian-pyramid level for a chunk of planes.

    filtered = conv_gauss(img)
    up       = 4 * conv_gauss(zero_stuff(filtered[::2, ::2]))
             = 4 * conv_gauss(filtered * even_row_and_col_mask)   (identity)
    diff     = img - up
    Emits `filtered` (the caller extracts `down = filtered[::2, ::2]`) and `diff`.
    """
    x = x_ref[...].astype(jnp.float32)
    P, H, W = x.shape
    filtered = _sep_gauss5(x)
    filt_ref[...] = filtered.astype(filt_ref.dtype)

    rows = jax.lax.broadcasted_iota(jnp.int32, (P, H, W), 1)
    cols = jax.lax.broadcasted_iota(jnp.int32, (P, H, W), 2)
    mask = ((rows & 1) == 0) & ((cols & 1) == 0)
    stuffed = jnp.where(mask, filtered, 0.0)        # == zero_stuff(downsample(filtered))

    up = 4.0 * _sep_gauss5(stuffed)
    diff_ref[...] = (x - up).astype(diff_ref.dtype)


# --------------------------------------------------------------------------
# pallas_call wrappers
# --------------------------------------------------------------------------

def _pick_plane_block(nc, h, w, budget_bytes=2 << 20, min_grid_steps=2):
    """Largest divisor of nc whose block fits the VMEM budget, preferring a
    grid with >= min_grid_steps iterations (so v7x's 2 TensorCores both work)."""
    divisors = [p for p in range(1, nc + 1) if nc % p == 0]
    fits = [p for p in divisors if p * h * w * 4 <= budget_bytes]
    if not fits:
        # TODO(synk): add row-slab (H) tiling with halos for planes too large for VMEM.
        return 1
    pref = [p for p in fits if nc // p >= min_grid_steps]
    return max(pref) if pref else max(fits)


def _call_planes(kernel, x, num_outputs):
    """Run `kernel` over (N*C, H, W) planes, `pb` planes per grid step."""
    n, c, h, w = x.shape
    assert h >= 3 and w >= 3, "reflect pad of 2 requires H, W >= 3"
    nc = n * c
    xp = x.reshape(nc, h, w)
    pb = _pick_plane_block(nc, h, w)
    grid = (nc // pb,)

    spec = pl.BlockSpec((pb, h, w), lambda i: (i, 0, 0))
    if num_outputs == 1:
        out_shape = jax.ShapeDtypeStruct((nc, h, w), x.dtype)
        out_specs = pl.BlockSpec((pb, h, w), lambda i: (i, 0, 0))
    else:
        out_shape = tuple(jax.ShapeDtypeStruct((nc, h, w), x.dtype)
                          for _ in range(num_outputs))
        out_specs = tuple(pl.BlockSpec((pb, h, w), lambda i: (i, 0, 0))
                          for _ in range(num_outputs))

    res = pl.pallas_call(
        kernel,
        out_shape=out_shape,
        grid_spec=pltpu.PrefetchScalarGridSpec(
            num_scalar_prefetch=0,
            grid=grid,
            in_specs=[spec],
            out_specs=out_specs),
        compiler_params=pltpu.CompilerParams(dimension_semantics=("parallel",)),
    )(xp)

    if num_outputs == 1:
        return res.reshape(n, c, h, w)
    return tuple(r.reshape(n, c, h, w) for r in res)


def conv_gauss(x, scale=1.0):
    """Equivalent of _conv_gauss (reflect pad 2 + depthwise 5x5), times `scale`."""
    return _call_planes(_make_blur_kernel(scale), x, 1)


def _downsample(x):
    return x[:, :, ::2, ::2]


def _upsample(x):
    # Zero-stuff by 2 in H and W (nonzeros at even indices), then 4 * conv_gauss.
    # The interleave is thin XLA glue; the blur runs in the Pallas kernel.
    n, c, h, w = x.shape
    up0 = jnp.zeros((n, c, 2 * h, 2 * w), x.dtype).at[:, :, ::2, ::2].set(x)
    return conv_gauss(up0, scale=4.0)


def _pyramid_level(img):
    """Fused level: returns (down, diff)."""
    h, w = img.shape[2], img.shape[3]
    assert h % 2 == 0 and w % 2 == 0, "Laplacian levels require even H, W"
    filtered, diff = _call_planes(_level_kernel, img, 2)
    # Lane-strided gather kept outside the kernel (cheap XLA strided slice).
    down = _downsample(filtered)
    return down, diff


# --------------------------------------------------------------------------
# Module-equivalent API
# --------------------------------------------------------------------------

def image_pyramid(img, pyramid_levels=3, mode="all"):
    """JAX/Pallas port of ImagePyramid.forward."""
    if img.ndim == 3:
        img = img[None]

    if mode == "gauss":
        gauss_pyramid = [img]
        for _ in range(pyramid_levels - 1):
            filtered = conv_gauss(img)
            down = _downsample(filtered)
            gauss_pyramid.append(down)
            img = down
        return gauss_pyramid
    elif mode == "laplacian":
        lap_pyramid = []
        for _ in range(pyramid_levels - 1):
            down, diff = _pyramid_level(img)
            lap_pyramid.append(diff)
            img = down
        lap_pyramid.append(img)
        return lap_pyramid
    elif mode == "all":
        gauss_pyramid = [img]
        lap_pyramid = []
        for _ in range(pyramid_levels - 1):
            down, diff = _pyramid_level(img)
            gauss_pyramid.append(down)
            lap_pyramid.append(diff)
            img = down
        lap_pyramid.append(img)
        return gauss_pyramid, lap_pyramid
    else:
        raise AssertionError("mode must be gauss, laplacian or all")


def laplacian_recon(laplacian_pyramid):
    recon = laplacian_pyramid[-1]
    for i in range(len(laplacian_pyramid) - 1, 0, -1):
        up = _upsample(recon)
        recon = up + laplacian_pyramid[i - 1]
    return recon


# --------------------------------------------------------------------------
# Self-test
# --------------------------------------------------------------------------

def _conv_gauss_reference(x):
    """Plain-JAX 25-tap reference (for numeric validation only)."""
    k = jnp.array([[1., 4., 6., 4., 1.],
                   [4., 16., 24., 16., 4.],
                   [6., 24., 36., 24., 6.],
                   [4., 16., 24., 16., 4.],
                   [1., 4., 6., 4., 1.]], jnp.float32) / 256.0
    h, w = x.shape[2], x.shape[3]
    xp = jnp.pad(x, ((0, 0), (0, 0), (2, 2), (2, 2)), mode="reflect")
    out = jnp.zeros_like(x)
    for a in range(5):
        for b in range(5):
            out = out + k[a, b] * xp[:, :, a:a + h, b:b + w]
    return out


if __name__ == "__main__":
    key = jax.random.PRNGKey(0)
    # Small NCHW input consistent with the module (3-channel image).
    x = jax.random.uniform(key, (2, 3, 16, 16), dtype=jnp.float32)

    # Validate the separable Pallas blur against the direct 25-tap reference.
    blur = jax.block_until_ready(conv_gauss(x))
    ref = jax.block_until_ready(_conv_gauss_reference(x))
    assert jnp.allclose(blur, ref, atol=1e-5), "conv_gauss mismatch vs reference"

    gauss_pyr, lap_pyr = image_pyramid(x, pyramid_levels=3, mode="all")
    gauss_pyr = [jax.block_until_ready(g) for g in gauss_pyr]
    lap_pyr = [jax.block_until_ready(l) for l in lap_pyr]

    # Shape checks: 16 -> 8 -> 4
    assert [tuple(g.shape) for g in gauss_pyr] == [(2, 3, 16, 16), (2, 3, 8, 8), (2, 3, 4, 4)]
    assert [tuple(l.shape) for l in lap_pyr] == [(2, 3, 16, 16), (2, 3, 8, 8), (2, 3, 4, 4)]

    # Laplacian reconstruction recovers the input (by construction).
    recon = jax.block_until_ready(laplacian_recon(lap_pyr))
    assert jnp.allclose(recon, x, atol=1e-5), "laplacian reconstruction mismatch"

    # Also exercise the single-channel (kernel_dim1 / groups=1) path.
    x1 = jax.random.uniform(jax.random.PRNGKey(1), (2, 1, 16, 16), dtype=jnp.float32)
    g1 = image_pyramid(x1, pyramid_levels=3, mode="gauss")
    _ = [jax.block_until_ready(g) for g in g1]

    print("KERNEL_OK")
</pallas_src>

<mosaic_0001>
module attributes {stable_mosaic.version = 11 : i64} {
  func.func @kernel(%arg0: i32, %arg1: memref<3x16x16xf32, #tpu.memory_space<vmem>>, %arg2: memref<3x16x16xf32, #tpu.memory_space<vmem>>) attributes {dimension_semantics = [#tpu.dimension_semantics<parallel>], iteration_bounds = array<i64: 2>, scalar_prefetch = 0 : i64, scratch_operands = 0 : i64, tpu.core_type = #tpu.core_type<tc>, window_params = [{transform_indices = @transform_0, window_bounds = array<i64: 3, 16, 16>}, {transform_indices = @transform_1, window_bounds = array<i64: 3, 16, 16>}]} {
    %c0 = arith.constant 0 : index
    %c0_0 = arith.constant 0 : index
    %c0_1 = arith.constant 0 : index
    %0 = vector.load %arg1[%c0, %c0_0, %c0_1] : memref<3x16x16xf32, #tpu.memory_space<vmem>>, vector<3x16x16xf32>
    %1 = vector.extract_strided_slice %0 {offsets = [0, 2, 0], sizes = [3, 1, 16], strides = [1, 1, 1]} : vector<3x16x16xf32> to vector<3x1x16xf32>
    %2 = vector.extract_strided_slice %0 {offsets = [0, 1, 0], sizes = [3, 1, 16], strides = [1, 1, 1]} : vector<3x16x16xf32> to vector<3x1x16xf32>
    %3 = vector.extract_strided_slice %0 {offsets = [0, 14, 0], sizes = [3, 1, 16], strides = [1, 1, 1]} : vector<3x16x16xf32> to vector<3x1x16xf32>
    %4 = vector.extract_strided_slice %0 {offsets = [0, 13, 0], sizes = [3, 1, 16], strides = [1, 1, 1]} : vector<3x16x16xf32> to vector<3x1x16xf32>
    %5 = tpu.concatenate %1, %2, %0, %3, %4 in 1 : vector<3x1x16xf32>, vector<3x1x16xf32>, vector<3x16x16xf32>, vector<3x1x16xf32>, vector<3x1x16xf32> -> vector<3x20x16xf32>
    %6 = vector.extract_strided_slice %5 {offsets = [0, 0, 2], sizes = [3, 20, 1], strides = [1, 1, 1]} : vector<3x20x16xf32> to vector<3x20x1xf32>
    %7 = vector.extract_strided_slice %5 {offsets = [0, 0, 1], sizes = [3, 20, 1], strides = [1, 1, 1]} : vector<3x20x16xf32> to vector<3x20x1xf32>
    %8 = vector.extract_strided_slice %5 {offsets = [0, 0, 14], sizes = [3, 20, 1], strides = [1, 1, 1]} : vector<3x20x16xf32> to vector<3x20x1xf32>
    %9 = vector.extract_strided_slice %5 {offsets = [0, 0, 13], sizes = [3, 20, 1], strides = [1, 1, 1]} : vector<3x20x16xf32> to vector<3x20x1xf32>
    %10 = tpu.concatenate %6, %7, %5, %8, %9 in 2 : vector<3x20x1xf32>, vector<3x20x1xf32>, vector<3x20x16xf32>, vector<3x20x1xf32>, vector<3x20x1xf32> -> vector<3x20x20xf32>
    %11 = vector.extract_strided_slice %10 {offsets = [0, 0, 0], sizes = [3, 20, 16], strides = [1, 1, 1]} : vector<3x20x20xf32> to vector<3x20x16xf32>
    %12 = vector.extract_strided_slice %10 {offsets = [0, 0, 4], sizes = [3, 20, 16], strides = [1, 1, 1]} : vector<3x20x20xf32> to vector<3x20x16xf32>
    %13 = arith.addf %11, %12 : vector<3x20x16xf32>
    %14 = vector.extract_strided_slice %10 {offsets = [0, 0, 1], sizes = [3, 20, 16], strides = [1, 1, 1]} : vector<3x20x20xf32> to vector<3x20x16xf32>
    %15 = vector.extract_strided_slice %10 {offsets = [0, 0, 3], sizes = [3, 20, 16], strides = [1, 1, 1]} : vector<3x20x20xf32> to vector<3x20x16xf32>
    %16 = arith.addf %14, %15 : vector<3x20x16xf32>
    %cst = arith.constant 4.000000e+00 : f32
    %17 = vector.broadcast %cst : f32 to vector<3x20x16xf32>
    %18 = arith.mulf %17, %16 : vector<3x20x16xf32>
    %19 = arith.addf %13, %18 : vector<3x20x16xf32>
    %20 = vector.extract_strided_slice %10 {offsets = [0, 0, 2], sizes = [3, 20, 16], strides = [1, 1, 1]} : vector<3x20x20xf32> to vector<3x20x16xf32>
    %cst_2 = arith.constant 6.000000e+00 : f32
    %21 = vector.broadcast %cst_2 : f32 to vector<3x20x16xf32>
    %22 = arith.mulf %21, %20 : vector<3x20x16xf32>
    %23 = arith.addf %19, %22 : vector<3x20x16xf32>
    %24 = vector.extract_strided_slice %23 {offsets = [0, 0, 0], sizes = [3, 16, 16], strides = [1, 1, 1]} : vector<3x20x16xf32> to vector<3x16x16xf32>
    %25 = vector.extract_strided_slice %23 {offsets = [0, 4, 0], sizes = [3, 16, 16], strides = [1, 1, 1]} : vector<3x20x16xf32> to vector<3x16x16xf32>
    %26 = arith.addf %24, %25 : vector<3x16x16xf32>
    %27 = vector.extract_strided_slice %23 {offsets = [0, 1, 0], sizes = [3, 16, 16], strides = [1, 1, 1]} : vector<3x20x16xf32> to vector<3x16x16xf32>
    %28 = vector.extract_strided_slice %23 {offsets = [0, 3, 0], sizes = [3, 16, 16], strides = [1, 1, 1]} : vector<3x20x16xf32> to vector<3x16x16xf32>
    %29 = arith.addf %27, %28 : vector<3x16x16xf32>
    %cst_3 = arith.constant 4.000000e+00 : f32
    %30 = vector.broadcast %cst_3 : f32 to vector<3x16x16xf32>
    %31 = arith.mulf %30, %29 : vector<3x16x16xf32>
    %32 = arith.addf %26, %31 : vector<3x16x16xf32>
    %33 = vector.extract_strided_slice %23 {offsets = [0, 2, 0], sizes = [3, 16, 16], strides = [1, 1, 1]} : vector<3x20x16xf32> to vector<3x16x16xf32>
    %cst_4 = arith.constant 6.000000e+00 : f32
    %34 = vector.broadcast %cst_4 : f32 to vector<3x16x16xf32>
    %35 = arith.mulf %34, %33 : vector<3x16x16xf32>
    %36 = arith.addf %32, %35 : vector<3x16x16xf32>
    %cst_5 = arith.constant 3.906250e-03 : f32
    %37 = vector.broadcast %cst_5 : f32 to vector<3x16x16xf32>
    %38 = arith.mulf %36, %37 : vector<3x16x16xf32>
    %cst_6 = arith.constant 1.000000e+00 : f32
    %39 = vector.broadcast %cst_6 : f32 to vector<3x16x16xf32>
    %40 = arith.mulf %39, %38 : vector<3x16x16xf32>
    %c0_7 = arith.constant 0 : index
    %c0_8 = arith.constant 0 : index
    %c0_9 = arith.constant 0 : index
    %41 = vector.load %arg2[%c0_7, %c0_8, %c0_9] : memref<3x16x16xf32, #tpu.memory_space<vmem>>, vector<3x16x16xf32>
    tpu.vector_store %arg2[%c0_7, %c0_8, %c0_9], %40 {strides = array<i32>} : memref<3x16x16xf32, #tpu.memory_space<vmem>>, vector<3x16x16xf32>,
    return
  }
  func.func @transform_0(%arg0: i32) -> (i32, i32, i32) {
    %c0_i32 = arith.constant 0 : i32
    %c0_i32_0 = arith.constant 0 : i32
    %c0_i32_1 = arith.constant 0 : i32
    return %arg0, %c0_i32, %c0_i32_0 : i32, i32, i32
  }
  func.func @transform_1(%arg0: i32) -> (i32, i32, i32) {
    %c0_i32 = arith.constant 0 : i32
    %c0_i32_0 = arith.constant 0 : i32
    %c0_i32_1 = arith.constant 0 : i32
    return %arg0, %c0_i32, %c0_i32_0 : i32, i32, i32
  }
}

</mosaic_0001>

<llo_original>
// kernel: tpu_custom_call.1
$region0: #{tpu_custom_call.1}
  #allocation0 [shape = 'u32[]', space=smem, size = 0x4, offset = 0x4, fixed_abs, tag = 'smem constant byte address 0x4 - core index']
  #allocation1 [shape = 'u32[144,128]{1,0:T(1,128)}', space=vmem, size = 0x12000, scoped, tag = 'internal scratch']
  %s0 = inlined_call_operand.hbm [shape: f32[6,16,16], index: 0, kind: input, shape index: {}]
  %s1 = inlined_call_operand.hbm [shape: f32[6,16,16], index: 1, kind: output, shape index: {}]
  %s2 = sld [smem:[#allocation0]]
  $region41: #{tpu_custom_call.1} parent=0
    _
  %s4 = ssub.s32 1, %s2
  %s5 = scalar_select 0, %s4, %s2
  $region1: #{tpu_custom_call.1} parent=0
    #allocation2 [shape = 'u8[49152]{0}', space=vmem, size = 0xc000, scoped, tag = 'input window, operand 0']
    #allocation3 [shape = 's32[2]{0}', space=sflag, size = 0x8, scoped, tag = 'scoped memory for tpu_custom_call.1']
    #allocation4 [shape = 's32[2]{0}', space=sflag, size = 0x8, scoped, tag = 'scoped memory for tpu_custom_call.1']
    #allocation5 [shape = 'u8[49152]{0}', space=vmem, size = 0xc000, scoped, tag = 'output window, operand 0']
    %6 = vsyncpa [#allocation3], 0
    %s7 = scalar_lea.sflag [#allocation3], 1
    %8 = vsyncpa %s7, 0
    %9 = vsyncpa [#allocation4], 0
    %s10 = scalar_lea.sflag [#allocation4], 1
    %11 = vsyncpa %s10, 0
    loop: start=0, step=1, limit=4
    $region2: #{tpu_custom_call.1} parent=1 // loop_pre_header
      _
    $region3: #{tpu_custom_call.1} parent=1 // loop_header
      %s13 = sphi 0, %s17
      %p14 = scmp.ge.s32.totalorder %s13, 4
      %s23 = sphi 0, %s25
      %s26 = sphi 0, %s23
      %s27 = sphi 0, %s26
      %s43 = sphi 0, %s27
      %s49 = sphi 0, %s51
      %s52 = sphi 0, %s49
      %s53 = sphi 0, %s52
      %s69 = sphi 0, %s53
    $region4: #{tpu_custom_call.1} parent=1 // loop_header_branch
      %16 = sbr.rel (%p14) target = $region8
    $region5: #{tpu_custom_call.1} parent=1 // loop_body
      %s18 = ssub.s32 %s13, 1
      %s19 = ssub.s32 %s13, 2
      %s20 = sadd.s32 %s13, 1
      %s21 = ssub.s32 %s13, %s20
      %p22 = scmp.eq.s32.totalorder %s21, 0
      %s24 = sadd.s32 %s23, 1
      %s25 = scalar_select %p22, %s23, %s24
      %p28 = pneg %p22
      %p29 = scmp.eq.s32.totalorder %s13, 1
      %p30 = por %p28, %p29
      %p31 = scmp.ne.s32.totalorder %s23, %s26
      %p32 = scmp.eq.s32.totalorder %s13, 0
      %p33 = por %p31, %p32
      %p34 = scmp.ne.s32.totalorder %s23, %s26
      %p35 = scmp.eq.s32.totalorder %s18, 1
      %p36 = por %p34, %p35
      %p37 = scmp.ne.s32.totalorder %s26, %s27
      %p38 = scmp.eq.s32.totalorder %s18, 0
      %p39 = por %p37, %p38
      %p40 = scmp.ne.s32.totalorder %s26, %s27
      %p41 = scmp.eq.s32.totalorder %s19, 1
      %p42 = por %p40, %p41
      %p44 = scmp.ne.s32.totalorder %s27, %s43
      %p45 = scmp.eq.s32.totalorder %s19, 0
      %p46 = por %p44, %p45
      %s47 = ssub.s32 %s13, %s20
      %p48 = scmp.eq.s32.totalorder %s47, 0
      %s50 = sadd.s32 %s49, 1
      %s51 = scalar_select %p48, %s49, %s50
      %p54 = pneg %p48
      %p55 = scmp.eq.s32.totalorder %s13, 1
      %p56 = por %p54, %p55
      %p57 = scmp.ne.s32.totalorder %s49, %s52
      %p58 = scmp.eq.s32.totalorder %s13, 0
      %p59 = por %p57, %p58
      %p60 = scmp.ne.s32.totalorder %s49, %s52
      %p61 = scmp.eq.s32.totalorder %s18, 1
      %p62 = por %p60, %p61
      %p63 = scmp.ne.s32.totalorder %s52, %s53
      %p64 = scmp.eq.s32.totalorder %s18, 0
      %p65 = por %p63, %p64
      %p66 = scmp.ne.s32.totalorder %s52, %s53
      %p67 = scmp.eq.s32.totalorder %s19, 1
      %p68 = por %p66, %p67
      %p70 = scmp.ne.s32.totalorder %s53, %s69
      %p71 = scmp.eq.s32.totalorder %s19, 0
      %p72 = por %p70, %p71
      %p73 = scmp.le.s32.totalorder 1, %s13
      %p74 = scmp.lt.s32.totalorder %s13, 3
      %p75 = pnand %p73, %p74
      %p76 = pneg %p75
      // Predicated region
      $region9: #{tpu_custom_call.1} parent=5 // pred_check
        _
      $region10: #{tpu_custom_call.1} parent=5 // pred_check_branch
        %78 = sbr.rel (%p75) target = $region12
      $region11: #{tpu_custom_call.1} parent=5 // pred_region
        %s79 = ssub.s32 %s13, 1
      $region12: #{tpu_custom_call.1} parent=5 // pred_fallthru
        _
      %p80 = scmp.lt.s32.totalorder %s13, 2
      // Predicated region
      $region13: #{tpu_custom_call.1} parent=5 // pred_check
        %p81 = pneg %p80
      $region14: #{tpu_custom_call.1} parent=5 // pred_check_branch
        %83 = sbr.rel (%p81) target = $region16
      $region15: #{tpu_custom_call.1} parent=5 // pred_region
        // Predicated region
        $region17: #{tpu_custom_call.1} parent=15 // pred_check
          %p84 = pneg %p33
        $region18: #{tpu_custom_call.1} parent=15 // pred_check_branch
          %86 = sbr.rel (%p84) target = $region20
        $region19: #{tpu_custom_call.1} parent=15 // pred_region
          %s87 = sand.u32 %s23, 1
          %s88 = scalar_lea.sflag [#allocation3], %s87
          %s89 = sand.u32 %s23, 1
          %s90 = smul.addr %s89, 48
          %s91 = scalar_lea.vmem [#allocation2], %s90
          %s92 = smul.u32 3, %s13
          %s94 = ssub.s32 768, 768
          %95 = vsyncadd %s88, %s94
          %s96 = smul.addr %s92, 2
          %s97 = smul.addr %s96, 128
          %s98 = scalar_lea.hbm %s0, %s97
          %s99 = sshll.u32 %s91, 4
          %s100 = int_to_ptr.vmem [resolvable:$true] %s99
          %105 = dma.hbm_to_vmem [thread:$0]  %s98, 768, %s100, %s88, 128, 128, 8
        $region20: #{tpu_custom_call.1} parent=15 // pred_fallthru
          _
      $region16: #{tpu_custom_call.1} parent=5 // pred_fallthru
        _
      %p106 = scmp.le.s32.totalorder 1, %s13
      %p107 = scmp.lt.s32.totalorder %s13, 3
      %p108 = pnand %p106, %p107
      %p109 = pneg %p108
      // Predicated region
      $region21: #{tpu_custom_call.1} parent=5 // pred_check
        _
      $region22: #{tpu_custom_call.1} parent=5 // pred_check_branch
        %111 = sbr.rel (%p108) target = $region24
      $region23: #{tpu_custom_call.1} parent=5 // pred_region
        %s112 = ssub.s32 %s13, 1
        %s113 = sand.u32 %s26, 1
        %s114 = scalar_lea.sflag [#allocation3], %s113
        %s115 = sand.u32 %s26, 1
        %s116 = smul.addr %s115, 48
        %s117 = scalar_lea.vmem [#allocation2], %s116
        // Predicated region
        $region25: #{tpu_custom_call.1} parent=23 // pred_check
          %p118 = pneg %p39
        $region26: #{tpu_custom_call.1} parent=23 // pred_check_branch
          %120 = sbr.rel (%p118) target = $region28
        $region27: #{tpu_custom_call.1} parent=23 // pred_region
          %121 = dma.done %s114, 768
        $region28: #{tpu_custom_call.1} parent=23 // pred_fallthru
          _
        %s122 = sand.u32 %s26, 1
        %s123 = scalar_lea.sflag [#allocation3], %s122
        %s124 = sand.u32 %s26, 1
        %s125 = smul.addr %s124, 48
        %s126 = scalar_lea.vmem [#allocation2], %s125
        %p127 = pneg %p39
        %p128 = pneg %p36
        %p129 = pneg %p65
        %p130 = pneg %p62
        %s131 = sand.u32 %s52, 1
        %s132 = scalar_lea.sflag [#allocation4], %s131
        %s133 = sand.u32 %s52, 1
        %s134 = smul.addr %s133, 48
        %s135 = scalar_lea.vmem [#allocation5], %s134
        %s136 = smul.u32 3, %s18
        %s137 = smul.u32 3, %s18
        %v138 = vld [vmem:[%s117] sm:$0xff]
        %v139 = vld [vmem:[%s117 + $0x8] sm:$0xff]
        %v140 = vld [vmem:[%s117 + $0x10] sm:$0xff]
        %v141 = vld [vmem:[%s117 + $0x18] sm:$0xff]
        %v142 = vld [vmem:[%s117 + $0x20] sm:$0xff]
        %v143 = vld [vmem:[%s117 + $0x28] sm:$0xff]
        %v147 = vrot.slane %v138, 2
        %v148 = vrot.slane %v140, 2
        %v149 = vrot.slane %v142, 2
        %vm156 = vcmask 1041408
        %v157 = vrot.slane %v138, 6
        %v158 = vrot.slane %v139, 6
        %v159 = vsel %vm156, %v157, %v158
        %v160 = vrot.slane %v140, 6
        %v161 = vrot.slane %v141, 6
        %v162 = vsel %vm156, %v160, %v161
        %v163 = vrot.slane %v142, 6
        %v164 = vrot.slane %v143, 6
        %v165 = vsel %vm156, %v163, %v164
        %v175 = vrot.slane %v139, 4
        %v176 = vrot.slane %v141, 4
        %v177 = vrot.slane %v143, 4
        %v181 = vrot.slane %v139, 2
        %v182 = vrot.slane %v141, 2
        %v183 = vrot.slane %v143, 2
        %vm187 = vcmask 1040384
        %v188 = vsel %vm187, %v147, %v138
        %v189 = vsel %vm187, %v148, %v140
        %v190 = vsel %vm187, %v149, %v142
        %v191 = vsel %vm156, %v188, %v157
        %v192 = vsel %vm156, %v189, %v160
        %v193 = vsel %vm156, %v190, %v163
        %v194 = vsel %vm156, %v158, %v175
        %v195 = vsel %vm156, %v161, %v176
        %v196 = vsel %vm156, %v164, %v177
        %vm197 = vcmask 1042432
        %v198 = vsel %vm197, %v194, %v181
        %v199 = vsel %vm197, %v195, %v182
        %v200 = vsel %vm197, %v196, %v183
        %207 = vrot.lane.b32.xlu0 %v191, 126
        %v208 = vpop.permute.xlu0 %207
        %209 = vrot.lane.b32.xlu0 %v159, 126
        %v210 = vpop.permute.xlu0 %209
        %211 = vrot.lane.b32.xlu0 %v198, 126
        %v212 = vpop.permute.xlu0 %211
        %213 = vrot.lane.b32.xlu0 %v192, 126
        %v214 = vpop.permute.xlu0 %213
        %215 = vrot.lane.b32.xlu0 %v162, 126
        %v216 = vpop.permute.xlu0 %215
        %217 = vrot.lane.b32.xlu0 %v199, 126
        %v218 = vpop.permute.xlu0 %217
        %219 = vrot.lane.b32.xlu0 %v193, 126
        %v220 = vpop.permute.xlu0 %219
        %221 = vrot.lane.b32.xlu0 %v165, 126
        %v222 = vpop.permute.xlu0 %221
        %223 = vrot.lane.b32.xlu0 %v200, 126
        %v224 = vpop.permute.xlu0 %223
        %234 = vrot.lane.b32.xlu0 %v191, 2
        %v235 = vpop.permute.xlu0 %234
        %236 = vrot.lane.b32.xlu0 %v159, 2
        %v237 = vpop.permute.xlu0 %236
        %238 = vrot.lane.b32.xlu0 %v198, 2
        %v239 = vpop.permute.xlu0 %238
        %240 = vrot.lane.b32.xlu0 %v192, 2
        %v241 = vpop.permute.xlu0 %240
        %242 = vrot.lane.b32.xlu0 %v162, 2
        %v243 = vpop.permute.xlu0 %242
        %244 = vrot.lane.b32.xlu0 %v199, 2
        %v245 = vpop.permute.xlu0 %244
        %246 = vrot.lane.b32.xlu0 %v193, 2
        %v247 = vpop.permute.xlu0 %246
        %248 = vrot.lane.b32.xlu0 %v165, 2
        %v249 = vpop.permute.xlu0 %248
        %250 = vrot.lane.b32.xlu0 %v200, 2
        %v251 = vpop.permute.xlu0 %250
        %261 = vrot.lane.b32.xlu0 %v191, 4
        %v262 = vpop.permute.xlu0 %261
        %263 = vrot.lane.b32.xlu0 %v159, 4
        %v264 = vpop.permute.xlu0 %263
        %265 = vrot.lane.b32.xlu0 %v198, 4
        %v266 = vpop.permute.xlu0 %265
        %267 = vrot.lane.b32.xlu0 %v192, 4
        %v268 = vpop.permute.xlu0 %267
        %269 = vrot.lane.b32.xlu0 %v162, 4
        %v270 = vpop.permute.xlu0 %269
        %271 = vrot.lane.b32.xlu0 %v199, 4
        %v272 = vpop.permute.xlu0 %271
        %273 = vrot.lane.b32.xlu0 %v193, 4
        %v274 = vpop.permute.xlu0 %273
        %275 = vrot.lane.b32.xlu0 %v165, 4
        %v276 = vpop.permute.xlu0 %275
        %277 = vrot.lane.b32.xlu0 %v200, 4
        %v278 = vpop.permute.xlu0 %277
        %288 = vrot.lane.b32.xlu0 %v191, 6
        %v289 = vpop.permute.xlu0 %288
        %290 = vrot.lane.b32.xlu0 %v159, 6
        %v291 = vpop.permute.xlu0 %290
        %292 = vrot.lane.b32.xlu0 %v198, 6
        %v293 = vpop.permute.xlu0 %292
        %294 = vrot.lane.b32.xlu0 %v192, 6
        %v295 = vpop.permute.xlu0 %294
        %296 = vrot.lane.b32.xlu0 %v162, 6
        %v297 = vpop.permute.xlu0 %296
        %298 = vrot.lane.b32.xlu0 %v199, 6
        %v299 = vpop.permute.xlu0 %298
        %300 = vrot.lane.b32.xlu0 %v193, 6
        %v301 = vpop.permute.xlu0 %300
        %302 = vrot.lane.b32.xlu0 %v165, 6
        %v303 = vpop.permute.xlu0 %302
        %304 = vrot.lane.b32.xlu0 %v200, 6
        %v305 = vpop.permute.xlu0 %304
        %vm315 = vcmask 7168
        %v316 = vsel %vm315, %v208, %v191
        %v317 = vsel %vm315, %v210, %v159
        %v318 = vsel %vm315, %v212, %v198
        %v319 = vsel %vm315, %v214, %v192
        %v320 = vsel %vm315, %v216, %v162
        %v321 = vsel %vm315, %v218, %v199
        %v322 = vsel %vm315, %v220, %v193
        %v323 = vsel %vm315, %v222, %v165
        %v324 = vsel %vm315, %v224, %v200
        %vm325 = vcmask 15360
        %v326 = vsel %vm325, %v316, %v235
        %v327 = vsel %vm325, %v317, %v237
        %v328 = vsel %vm325, %v318, %v239
        %v329 = vsel %vm325, %v319, %v241
        %v330 = vsel %vm325, %v320, %v243
        %v331 = vsel %vm325, %v321, %v245
        %v332 = vsel %vm325, %v322, %v247
        %v333 = vsel %vm325, %v323, %v249
        %v334 = vsel %vm325, %v324, %v251
        %vm335 = vcmask 146432
        %v336 = vsel %vm335, %v326, %v262
        %v337 = vsel %vm335, %v327, %v264
        %v338 = vsel %vm335, %v328, %v266
        %v339 = vsel %vm335, %v329, %v268
        %v340 = vsel %vm335, %v330, %v270
        %v341 = vsel %vm335, %v331, %v272
        %v342 = vsel %vm335, %v332, %v274
        %v343 = vsel %vm335, %v333, %v276
        %v344 = vsel %vm335, %v334, %v278
        %vm345 = vcmask 154624
        %v346 = vsel %vm345, %v336, %v289
        %v347 = vsel %vm345, %v337, %v291
        %v348 = vsel %vm345, %v338, %v293
        %v349 = vsel %vm345, %v339, %v295
        %v350 = vsel %vm345, %v340, %v297
        %v351 = vsel %vm345, %v341, %v299
        %v352 = vsel %vm345, %v342, %v301
        %v353 = vsel %vm345, %v343, %v303
        %v354 = vsel %vm345, %v344, %v305
        %364 = vrot.lane.b32.xlu0 %v346, 124
        %v365 = vpop.permute.xlu0 %364
        %366 = vrot.lane.b32.xlu0 %v347, 124
        %v367 = vpop.permute.xlu0 %366
        %368 = vrot.lane.b32.xlu0 %v348, 124
        %v369 = vpop.permute.xlu0 %368
        %370 = vrot.lane.b32.xlu0 %v349, 124
        %v371 = vpop.permute.xlu0 %370
        %372 = vrot.lane.b32.xlu0 %v350, 124
        %v373 = vpop.permute.xlu0 %372
        %374 = vrot.lane.b32.xlu0 %v351, 124
        %v375 = vpop.permute.xlu0 %374
        %376 = vrot.lane.b32.xlu0 %v352, 124
        %v377 = vpop.permute.xlu0 %376
        %378 = vrot.lane.b32.xlu0 %v353, 124
        %v379 = vpop.permute.xlu0 %378
        %380 = vrot.lane.b32.xlu0 %v354, 124
        %v381 = vpop.permute.xlu0 %380
        %v391 = vadd.f32 %v346, %v365
        %v392 = vadd.f32 %v347, %v367
        %v393 = vadd.f32 %v348, %v369
        %v394 = vadd.f32 %v349, %v371
        %v395 = vadd.f32 %v350, %v373
        %v396 = vadd.f32 %v351, %v375
        %v397 = vadd.f32 %v352, %v377
        %v398 = vadd.f32 %v353, %v379
        %v399 = vadd.f32 %v354, %v381
        %400 = vrot.lane.b32.xlu0 %v346, 126
        %v401 = vpop.permute.xlu0 %400
        %402 = vrot.lane.b32.xlu0 %v347, 126
        %v403 = vpop.permute.xlu0 %402
        %404 = vrot.lane.b32.xlu0 %v348, 126
        %v405 = vpop.permute.xlu0 %404
        %406 = vrot.lane.b32.xlu0 %v349, 126
        %v407 = vpop.permute.xlu0 %406
        %408 = vrot.lane.b32.xlu0 %v350, 126
        %v409 = vpop.permute.xlu0 %408
        %410 = vrot.lane.b32.xlu0 %v351, 126
        %v411 = vpop.permute.xlu0 %410
        %412 = vrot.lane.b32.xlu0 %v352, 126
        %v413 = vpop.permute.xlu0 %412
        %414 = vrot.lane.b32.xlu0 %v353, 126
        %v415 = vpop.permute.xlu0 %414
        %416 = vrot.lane.b32.xlu0 %v354, 126
        %v417 = vpop.permute.xlu0 %416
        %v427 = vadd.f32 %v346, %v401
        %v428 = vadd.f32 %v347, %v403
        %v429 = vadd.f32 %v348, %v405
        %v430 = vadd.f32 %v349, %v407
        %v431 = vadd.f32 %v350, %v409
        %v432 = vadd.f32 %v351, %v411
        %v433 = vadd.f32 %v352, %v413
        %v434 = vadd.f32 %v353, %v415
        %v435 = vadd.f32 %v354, %v417
        %v436 = vmul.f32 %v427, 4.0
        %v437 = vmul.f32 %v428, 4.0
        %v438 = vmul.f32 %v429, 4.0
        %v439 = vmul.f32 %v430, 4.0
        %v440 = vmul.f32 %v431, 4.0
        %v441 = vmul.f32 %v432, 4.0
        %v442 = vmul.f32 %v433, 4.0
        %v443 = vmul.f32 %v434, 4.0
        %v444 = vmul.f32 %v435, 4.0
        %454 = vrot.lane.b32.xlu0 %v436, 127
        %v455 = vpop.permute.xlu0 %454
        %456 = vrot.lane.b32.xlu0 %v437, 127
        %v457 = vpop.permute.xlu0 %456
        %458 = vrot.lane.b32.xlu0 %v438, 127
        %v459 = vpop.permute.xlu0 %458
        %460 = vrot.lane.b32.xlu0 %v439, 127
        %v461 = vpop.permute.xlu0 %460
        %462 = vrot.lane.b32.xlu0 %v440, 127
        %v463 = vpop.permute.xlu0 %462
        %464 = vrot.lane.b32.xlu0 %v441, 127
        %v465 = vpop.permute.xlu0 %464
        %466 = vrot.lane.b32.xlu0 %v442, 127
        %v467 = vpop.permute.xlu0 %466
        %468 = vrot.lane.b32.xlu0 %v443, 127
        %v469 = vpop.permute.xlu0 %468
        %470 = vrot.lane.b32.xlu0 %v444, 127
        %v471 = vpop.permute.xlu0 %470
        %v481 = vadd.f32 %v391, %v455
        %v482 = vadd.f32 %v392, %v457
        %v483 = vadd.f32 %v393, %v459
        %v484 = vadd.f32 %v394, %v461
        %v485 = vadd.f32 %v395, %v463
        %v486 = vadd.f32 %v396, %v465
        %v487 = vadd.f32 %v397, %v467
        %v488 = vadd.f32 %v398, %v469
        %v489 = vadd.f32 %v399, %v471
        %v490 = vmul.f32 %v346, 6.0
        %v491 = vmul.f32 %v347, 6.0
        %v492 = vmul.f32 %v348, 6.0
        %v493 = vmul.f32 %v349, 6.0
        %v494 = vmul.f32 %v350, 6.0
        %v495 = vmul.f32 %v351, 6.0
        %v496 = vmul.f32 %v352, 6.0
        %v497 = vmul.f32 %v353, 6.0
        %v498 = vmul.f32 %v354, 6.0
        %508 = vrot.lane.b32.xlu0 %v490, 126
        %v509 = vpop.permute.xlu0 %508
        %510 = vrot.lane.b32.xlu0 %v491, 126
        %v511 = vpop.permute.xlu0 %510
        %512 = vrot.lane.b32.xlu0 %v492, 126
        %v513 = vpop.permute.xlu0 %512
        %514 = vrot.lane.b32.xlu0 %v493, 126
        %v515 = vpop.permute.xlu0 %514
        %516 = vrot.lane.b32.xlu0 %v494, 126
        %v517 = vpop.permute.xlu0 %516
        %518 = vrot.lane.b32.xlu0 %v495, 126
        %v519 = vpop.permute.xlu0 %518
        %520 = vrot.lane.b32.xlu0 %v496, 126
        %v521 = vpop.permute.xlu0 %520
        %522 = vrot.lane.b32.xlu0 %v497, 126
        %v523 = vpop.permute.xlu0 %522
        %524 = vrot.lane.b32.xlu0 %v498, 126
        %v525 = vpop.permute.xlu0 %524
        %v535 = vadd.f32 %v481, %v509
        %v536 = vadd.f32 %v482, %v511
        %v537 = vadd.f32 %v483, %v513
        %v538 = vadd.f32 %v484, %v515
        %v539 = vadd.f32 %v485, %v517
        %v540 = vadd.f32 %v486, %v519
        %v541 = vadd.f32 %v487, %v521
        %v542 = vadd.f32 %v488, %v523
        %v543 = vadd.f32 %v489, %v525
        %vm553 = vcmask 1043456
        %v554 = vrot.slane %v535, 4
        %v555 = vrot.slane %v536, 4
        %v556 = vsel %vm553, %v554, %v555
        %v557 = vrot.slane %v537, 4
        %v558 = vsel %vm553, %v555, %v557
        %v559 = vrot.slane %v538, 4
        %v560 = vrot.slane %v539, 4
        %v561 = vsel %vm553, %v559, %v560
        %v562 = vrot.slane %v540, 4
        %v563 = vsel %vm553, %v560, %v562
        %v564 = vrot.slane %v541, 4
        %v565 = vrot.slane %v542, 4
        %v566 = vsel %vm553, %v564, %v565
        %v567 = vrot.slane %v543, 4
        %v568 = vsel %vm553, %v565, %v567
        %v575 = vadd.f32 %v535, %v556
        %v576 = vadd.f32 %v536, %v558
        %v577 = vadd.f32 %v538, %v561
        %v578 = vadd.f32 %v539, %v563
        %v579 = vadd.f32 %v541, %v566
        %v580 = vadd.f32 %v542, %v568
        %vm581 = vcmask 1045504
        %v582 = vrot.slane %v535, 2
        %v583 = vrot.slane %v536, 2
        %v584 = vsel %vm581, %v582, %v583
        %v585 = vrot.slane %v537, 2
        %v586 = vsel %vm581, %v583, %v585
        %v587 = vrot.slane %v538, 2
        %v588 = vrot.slane %v539, 2
        %v589 = vsel %vm581, %v587, %v588
        %v590 = vrot.slane %v540, 2
        %v591 = vsel %vm581, %v588, %v590
        %v592 = vrot.slane %v541, 2
        %v593 = vrot.slane %v542, 2
        %v594 = vsel %vm581, %v592, %v593
        %v595 = vrot.slane %v543, 2
        %v596 = vsel %vm581, %v593, %v595
        %v606 = vadd.f32 %v535, %v584
        %v607 = vadd.f32 %v536, %v586
        %v608 = vadd.f32 %v537, %v585
        %v609 = vadd.f32 %v538, %v589
        %v610 = vadd.f32 %v539, %v591
        %v611 = vadd.f32 %v540, %v590
        %v612 = vadd.f32 %v541, %v594
        %v613 = vadd.f32 %v542, %v596
        %v614 = vadd.f32 %v543, %v595
        %v615 = vmul.f32 %v606, 4.0
        %v616 = vmul.f32 %v607, 4.0
        %v617 = vmul.f32 %v608, 4.0
        %v618 = vmul.f32 %v609, 4.0
        %v619 = vmul.f32 %v610, 4.0
        %v620 = vmul.f32 %v611, 4.0
        %v621 = vmul.f32 %v612, 4.0
        %v622 = vmul.f32 %v613, 4.0
        %v623 = vmul.f32 %v614, 4.0
        %vm633 = vcmask 1046528
        %v634 = vrot.slane %v615, 1
        %v635 = vrot.slane %v616, 1
        %v636 = vsel %vm633, %v634, %v635
        %v637 = vrot.slane %v617, 1
        %v638 = vsel %vm633, %v635, %v637
        %v639 = vrot.slane %v618, 1
        %v640 = vrot.slane %v619, 1
        %v641 = vsel %vm633, %v639, %v640
        %v642 = vrot.slane %v620, 1
        %v643 = vsel %vm633, %v640, %v642
        %v644 = vrot.slane %v621, 1
        %v645 = vrot.slane %v622, 1
        %v646 = vsel %vm633, %v644, %v645
        %v647 = vrot.slane %v623, 1
        %v648 = vsel %vm633, %v645, %v647
        %v655 = vadd.f32 %v575, %v636
        %v656 = vadd.f32 %v576, %v638
        %v657 = vadd.f32 %v577, %v641
        %v658 = vadd.f32 %v578, %v643
        %v659 = vadd.f32 %v579, %v646
        %v660 = vadd.f32 %v580, %v648
        %v661 = vmul.f32 %v535, 6.0
        %v662 = vmul.f32 %v536, 6.0
        %v663 = vmul.f32 %v537, 6.0
        %v664 = vmul.f32 %v538, 6.0
        %v665 = vmul.f32 %v539, 6.0
        %v666 = vmul.f32 %v540, 6.0
        %v667 = vmul.f32 %v541, 6.0
        %v668 = vmul.f32 %v542, 6.0
        %v669 = vmul.f32 %v543, 6.0
        %v679 = vrot.slane %v661, 2
        %v680 = vrot.slane %v662, 2
        %v681 = vsel %vm581, %v679, %v680
        %v682 = vrot.slane %v663, 2
        %v683 = vsel %vm581, %v680, %v682
        %v684 = vrot.slane %v664, 2
        %v685 = vrot.slane %v665, 2
        %v686 = vsel %vm581, %v684, %v685
        %v687 = vrot.slane %v666, 2
        %v688 = vsel %vm581, %v685, %v687
        %v689 = vrot.slane %v667, 2
        %v690 = vrot.slane %v668, 2
        %v691 = vsel %vm581, %v689, %v690
        %v692 = vrot.slane %v669, 2
        %v693 = vsel %vm581, %v690, %v692
        %v700 = vadd.f32 %v655, %v681
        %v701 = vadd.f32 %v656, %v683
        %v702 = vadd.f32 %v657, %v686
        %v703 = vadd.f32 %v658, %v688
        %v704 = vadd.f32 %v659, %v691
        %v705 = vadd.f32 %v660, %v693
        %v706 = vmul.f32 %v700, 0.00390625
        %v707 = vmul.f32 %v701, 0.00390625
        %v708 = vmul.f32 %v702, 0.00390625
        %v709 = vmul.f32 %v703, 0.00390625
        %v710 = vmul.f32 %v704, 0.00390625
        %v711 = vmul.f32 %v705, 0.00390625
        %vm712 = vcmask 130048
        %713 = vst.msk [vmem:[%s135] sm:$0xff] %vm712, %v706
        %714 = vst.msk [vmem:[%s135 + $0x8] sm:$0xff] %vm712, %v707
        %715 = vst.msk [vmem:[%s135 + $0x10] sm:$0xff] %vm712, %v708
        %716 = vst.msk [vmem:[%s135 + $0x18] sm:$0xff] %vm712, %v709
        %717 = vst.msk [vmem:[%s135 + $0x20] sm:$0xff] %vm712, %v710
        %718 = vst.msk [vmem:[%s135 + $0x28] sm:$0xff] %vm712, %v711
        %s719 = sand.u32 %s52, 1
        %s720 = scalar_lea.sflag [#allocation4], %s719
        %s721 = sand.u32 %s52, 1
        %s722 = smul.addr %s721, 48
        %s723 = scalar_lea.vmem [#allocation5], %s722
        // Predicated region
        $region29: #{tpu_custom_call.1} parent=23 // pred_check
          %p724 = pneg %p62
        $region30: #{tpu_custom_call.1} parent=23 // pred_check_branch
          %726 = sbr.rel (%p724) target = $region32
        $region31: #{tpu_custom_call.1} parent=23 // pred_region
          %s727 = smul.u32 3, %s18
          %s729 = ssub.s32 768, 768
          %730 = vsyncadd %s720, %s729
          %s731 = smul.addr %s727, 2
          %s732 = smul.addr %s731, 128
          %s733 = scalar_lea.hbm %s1, %s732
          %s734 = sshll.u32 %s723, 4
          %s735 = int_to_ptr.vmem [resolvable:$true] %s734
          %740 = dma.vmem_to_hbm [thread:$0]  %s735, 768, %s733, %s720, 128, 128, 8
        $region32: #{tpu_custom_call.1} parent=23 // pred_fallthru
          _
      $region24: #{tpu_custom_call.1} parent=5 // pred_fallthru
        _
      %p741 = scmp.le.s32.totalorder 2, %s13
      // Predicated region
      $region33: #{tpu_custom_call.1} parent=5 // pred_check
        %p742 = pneg %p741
      $region34: #{tpu_custom_call.1} parent=5 // pred_check_branch
        %744 = sbr.rel (%p742) target = $region36
      $region35: #{tpu_custom_call.1} parent=5 // pred_region
        %s745 = ssub.s32 %s13, 2
        // Predicated region
        $region37: #{tpu_custom_call.1} parent=35 // pred_check
          %p746 = pneg %p68
        $region38: #{tpu_custom_call.1} parent=35 // pred_check_branch
          %748 = sbr.rel (%p746) target = $region40
        $region39: #{tpu_custom_call.1} parent=35 // pred_region
          %s749 = sand.u32 %s53, 1
          %s750 = scalar_lea.sflag [#allocation4], %s749
          %s751 = sand.u32 %s53, 1
          %s752 = smul.addr %s751, 48
          %s753 = scalar_lea.vmem [#allocation5], %s752
          %754 = dma.done %s750, 768
        $region40: #{tpu_custom_call.1} parent=35 // pred_fallthru
          _
      $region36: #{tpu_custom_call.1} parent=5 // pred_fallthru
        _
    $region6: #{tpu_custom_call.1} parent=1 // loop_footer
      %s17 = sadd.s32 1, %s13
    $region7: #{tpu_custom_call.1} parent=1 // loop_footer_branch
      %12 = sbr.rel target = $region3
    $region8: #{tpu_custom_call.1} parent=1 // loop_exit
      _
    %755 = vsyncpa [#allocation3], 1
    %s756 = scalar_lea.sflag [#allocation3], 1
    %757 = vsyncpa %s756, 1
    %758 = vsyncpa [#allocation4], 1
    %s759 = scalar_lea.sflag [#allocation4], 1
    %760 = vsyncpa %s759, 1

</llo_original>
